<compile_context>
chip_gen: v7x
topology: tpu7x:2x2x1
jax: 0.10.0
libtpu: 0.0.40
codegen_flags: <defaults>
</compile_context>

<pallas_src>
import functools

import numpy as np

import jax
import jax.numpy as jnp
from jax.experimental import pallas as pl
from jax.experimental.pallas import tpu as pltpu


def _round_up(v, m):
    return (v + m - 1) // m * m


def _vmem_capacity_bytes(default=64 * 1024 * 1024):
    try:
        return int(getattr(pltpu.get_tpu_info(), "vmem_capacity_bytes", default))
    except Exception:
        return default


def ac_kernel(x_ref, top_ref, bot_ref, o_ref, *, alpha, beta, H):
    """One (TR, W) row block of one image; top/bot are its 1-row halos."""
    x = x_ref[...]                        # (TR, W) current rows
    top = top_ref[...]                    # (1, W)  row above block (edge-clamped)
    bot = bot_ref[...]                    # (1, W)  row below block (edge-clamped)
    TR, W = x.shape

    # Vertical neighbours: sublane shift within the block; halos fill the ends.
    if TR > 1:
        up = jnp.concatenate([top, x[: TR - 1, :]], axis=0)    # x[i-1, j]
        dn = jnp.concatenate([x[1:, :], bot], axis=0)          # x[i+1, j]
    else:
        up = top
        dn = bot

    # Horizontal neighbours: lane shift with edge replication baked in.
    if W > 1:
        lt = jnp.concatenate([x[:, :1], x[:, : W - 1]], axis=1)   # x[i, j-1]
        rt = jnp.concatenate([x[:, 1:], x[:, W - 1:]], axis=1)    # x[i, j+1]
    else:
        lt = x
        rt = x

    # Bottom-edge replication for a partial last block (H % TR != 0): global
    # row H-1 then sits mid-block, where the in-block "down" shift reads the
    # (masked-on-write) padding rows instead of replicating row H-1.
    if H % TR != 0:
        row0 = pl.program_id(1) * TR
        rows = row0 + jax.lax.broadcasted_iota(jnp.int32, (TR, W), 0)
        dn = jnp.where(rows >= H - 1, x, dn)

    lap = up + dn + lt + rt - 4.0 * x          # == conv2d(rep_pad(x), delta)
    o_ref[...] = alpha * lap + (1.0 + beta) * x - beta * (x * x * x)


def ac_forward(x_nchw, *, dt, c, r, h, row_block=None):
    """x_nchw: (N, 1, H, W) -> (N, 1, H, W); matches the PyTorch AC module."""
    # NOTE: alpha/beta are baked in as compile-time constants; switch to SMEM
    # scalar-prefetch if they vary at runtime (avoids recompiles).
    alpha = float(dt * c / h ** 2)
    beta = float(r * dt)

    N, C, H, W = x_nchw.shape
    assert C == 1, "AC's delta kernel is single-channel (in=out=1)."
    B = N * C
    x = x_nchw.reshape(B, H, W)
    itemsize = x.dtype.itemsize

    # ---- generation-aware tile budget -------------------------------------
    vmem_cap = _vmem_capacity_bytes()
    if vmem_cap >= 96 * 1024 * 1024:          # v5e / v6e: 128 MiB VMEM
        target_tile_bytes = 8 * 1024 * 1024
        vmem_limit = 100 * 1024 * 1024
    else:                                     # v7x: 64 MiB VMEM per core
        target_tile_bytes = 4 * 1024 * 1024
        vmem_limit = 56 * 1024 * 1024

    # ---- row tile: multiple of 8 sublanes, or the full image ---------------
    if row_block is not None:
        tr = min(int(row_block), H)
        assert tr == H or tr % 8 == 0, "row_block must be H or a multiple of 8"
    else:
        row_bytes = max(1, W * itemsize)
        tr = max(8, (target_tile_bytes // row_bytes) // 8 * 8)
        if tr >= H:
            tr = H
        # A single image that fits in one block: split it in two so both
        # TensorCores of a megacore part get work (harmless on 1-core chips).
        if B == 1 and tr == H and H > 8:
            tr = min(H, _round_up(-(-H // 2), 8))

    R = -(-H // tr)                           # row blocks per image (cdiv)

    # One-row top/bottom halos per row block, clamped at the image edges
    # (this is exactly ReplicationPad2d's behaviour at the first/last row).
    ridx = np.arange(R)
    top_rows = np.maximum(ridx * tr - 1, 0)
    bot_rows = np.minimum((ridx + 1) * tr, H - 1)
    top = x[:, top_rows, :].reshape(B, R, 1, W)
    bot = x[:, bot_rows, :].reshape(B, R, 1, W)

    kernel = functools.partial(ac_kernel, alpha=alpha, beta=beta, H=H)

    out = pl.pallas_call(
        kernel,
        out_shape=jax.ShapeDtypeStruct((B, H, W), x.dtype),
        grid_spec=pltpu.PrefetchScalarGridSpec(
            num_scalar_prefetch=0,
            grid=(B, R),
            in_specs=[
                pl.BlockSpec((None, tr, W), lambda b, rb: (b, rb, 0)),
                pl.BlockSpec((None, None, 1, W), lambda b, rb: (b, rb, 0, 0)),
                pl.BlockSpec((None, None, 1, W), lambda b, rb: (b, rb, 0, 0)),
            ],
            out_specs=pl.BlockSpec((None, tr, W), lambda b, rb: (b, rb, 0)),
        ),
        compiler_params=pltpu.CompilerParams(
            dimension_semantics=("parallel", "parallel"),
            vmem_limit_bytes=vmem_limit,
        ),
    )(x, top, bot)

    return out.reshape(N, C, H, W)


def ac_reference(x_nchw, *, dt, c, r, h):
    """Pure-JAX reference matching the PyTorch module exactly."""
    alpha = dt * c / h ** 2
    beta = r * dt
    x = x_nchw[:, 0]  # (N, H, W)
    xp = jnp.pad(x, ((0, 0), (1, 1), (1, 1)), mode="edge")
    lap = (xp[:, :-2, 1:-1] + xp[:, 2:, 1:-1] + xp[:, 1:-1, :-2]
           + xp[:, 1:-1, 2:] - 4.0 * x)
    out = alpha * lap + (1.0 + beta) * x - beta * x ** 3
    return out[:, None, :, :]


if __name__ == "__main__":
    dt, c, r, h = 0.01, 1.0, 1.0, 1.0
    key = jax.random.PRNGKey(0)
    k1, k2, k3 = jax.random.split(key, 3)

    # Case 1: whole image per block, W not a lane multiple (masked vst path).
    x = jax.random.normal(k1, (2, 1, 16, 16), dtype=jnp.float32)
    out = jax.block_until_ready(ac_forward(x, dt=dt, c=c, r=r, h=h))
    ref = ac_reference(x, dt=dt, c=c, r=r, h=h)
    assert out.shape == x.shape and out.dtype == x.dtype
    assert jnp.allclose(out, ref, atol=1e-5, rtol=1e-5), "mismatch (case 1)"

    # Case 2: single image, automatic row split (exercises cross-block halos).
    x1 = jax.random.normal(k2, (1, 1, 32, 32), dtype=jnp.float32)
    out1 = jax.block_until_ready(ac_forward(x1, dt=dt, c=c, r=r, h=h))
    ref1 = ac_reference(x1, dt=dt, c=c, r=r, h=h)
    assert jnp.allclose(out1, ref1, atol=1e-5, rtol=1e-5), "mismatch (case 2)"

    # Case 3: forced row tiling with a partial last block + clamped halos.
    xb = jax.random.normal(k3, (2, 1, 40, 48), dtype=jnp.float32)
    outb = jax.block_until_ready(
        ac_forward(xb, dt=dt, c=c, r=r, h=h, row_block=16))
    refb = ac_reference(xb, dt=dt, c=c, r=r, h=h)
    assert jnp.allclose(outb, refb, atol=1e-5, rtol=1e-5), "mismatch (case 3)"

    print("KERNEL_OK")
</pallas_src>

<mosaic_0001>
module attributes {stable_mosaic.version = 11 : i64} {
  func.func @ac_kernel(%arg0: i32, %arg1: i32, %arg2: memref<1x16x16xf32, #tpu.memory_space<vmem>>, %arg3: memref<1x1x1x16xf32, #tpu.memory_space<vmem>>, %arg4: memref<1x1x1x16xf32, #tpu.memory_space<vmem>>, %arg5: memref<1x16x16xf32, #tpu.memory_space<vmem>>) attributes {dimension_semantics = [#tpu.dimension_semantics<parallel>, #tpu.dimension_semantics<parallel>], iteration_bounds = array<i64: 2, 1>, scalar_prefetch = 0 : i64, scratch_operands = 0 : i64, tpu.core_type = #tpu.core_type<tc>, window_params = [{transform_indices = @transform_0, window_bounds = array<i64: 1, 16, 16>}, {transform_indices = @transform_1, window_bounds = array<i64: 1, 1, 1, 16>}, {transform_indices = @transform_2, window_bounds = array<i64: 1, 1, 1, 16>}, {transform_indices = @transform_3, window_bounds = array<i64: 1, 16, 16>}]} {
    %c0 = arith.constant 0 : index
    %c0_0 = arith.constant 0 : index
    %c0_1 = arith.constant 0 : index
    %0 = vector.load %arg2[%c0, %c0_0, %c0_1] : memref<1x16x16xf32, #tpu.memory_space<vmem>>, vector<1x16x16xf32>
    %1 = vector.shape_cast %0 : vector<1x16x16xf32> to vector<16x16xf32>
    %c0_2 = arith.constant 0 : index
    %c0_3 = arith.constant 0 : index
    %c0_4 = arith.constant 0 : index
    %c0_5 = arith.constant 0 : index
    %2 = vector.load %arg3[%c0_2, %c0_3, %c0_4, %c0_5] : memref<1x1x1x16xf32, #tpu.memory_space<vmem>>, vector<1x1x1x16xf32>
    %3 = vector.shape_cast %2 : vector<1x1x1x16xf32> to vector<1x16xf32>
    %c0_6 = arith.constant 0 : index
    %c0_7 = arith.constant 0 : index
    %c0_8 = arith.constant 0 : index
    %c0_9 = arith.constant 0 : index
    %4 = vector.load %arg4[%c0_6, %c0_7, %c0_8, %c0_9] : memref<1x1x1x16xf32, #tpu.memory_space<vmem>>, vector<1x1x1x16xf32>
    %5 = vector.shape_cast %4 : vector<1x1x1x16xf32> to vector<1x16xf32>
    %6 = vector.extract_strided_slice %1 {offsets = [0, 0], sizes = [15, 16], strides = [1, 1]} : vector<16x16xf32> to vector<15x16xf32>
    %7 = tpu.concatenate %3, %6 in 0 : vector<1x16xf32>, vector<15x16xf32> -> vector<16x16xf32>
    %8 = vector.extract_strided_slice %1 {offsets = [1, 0], sizes = [15, 16], strides = [1, 1]} : vector<16x16xf32> to vector<15x16xf32>
    %9 = tpu.concatenate %8, %5 in 0 : vector<15x16xf32>, vector<1x16xf32> -> vector<16x16xf32>
    %10 = vector.extract_strided_slice %1 {offsets = [0, 0], sizes = [16, 1], strides = [1, 1]} : vector<16x16xf32> to vector<16x1xf32>
    %11 = vector.extract_strided_slice %1 {offsets = [0, 0], sizes = [16, 15], strides = [1, 1]} : vector<16x16xf32> to vector<16x15xf32>
    %12 = tpu.concatenate %10, %11 in 1 : vector<16x1xf32>, vector<16x15xf32> -> vector<16x16xf32>
    %13 = vector.extract_strided_slice %1 {offsets = [0, 1], sizes = [16, 15], strides = [1, 1]} : vector<16x16xf32> to vector<16x15xf32>
    %14 = vector.extract_strided_slice %1 {offsets = [0, 15], sizes = [16, 1], strides = [1, 1]} : vector<16x16xf32> to vector<16x1xf32>
    %15 = tpu.concatenate %13, %14 in 1 : vector<16x15xf32>, vector<16x1xf32> -> vector<16x16xf32>
    %16 = arith.addf %7, %9 : vector<16x16xf32>
    %17 = arith.addf %16, %12 : vector<16x16xf32>
    %18 = arith.addf %17, %15 : vector<16x16xf32>
    %cst = arith.constant 4.000000e+00 : f32
    %19 = vector.broadcast %cst : f32 to vector<16x16xf32>
    %20 = arith.mulf %19, %1 : vector<16x16xf32>
    %21 = arith.subf %18, %20 : vector<16x16xf32>
    %cst_10 = arith.constant 0.00999999977 : f32
    %22 = vector.broadcast %cst_10 : f32 to vector<16x16xf32>
    %23 = arith.mulf %22, %21 : vector<16x16xf32>
    %cst_11 = arith.constant 1.010000e+00 : f32
    %24 = vector.broadcast %cst_11 : f32 to vector<16x16xf32>
    %25 = arith.mulf %24, %1 : vector<16x16xf32>
    %26 = arith.addf %23, %25 : vector<16x16xf32>
    %27 = arith.mulf %1, %1 : vector<16x16xf32>
    %28 = arith.mulf %27, %1 : vector<16x16xf32>
    %cst_12 = arith.constant 0.00999999977 : f32
    %29 = vector.broadcast %cst_12 : f32 to vector<16x16xf32>
    %30 = arith.mulf %29, %28 : vector<16x16xf32>
    %31 = arith.subf %26, %30 : vector<16x16xf32>
    %c0_13 = arith.constant 0 : index
    %c0_14 = arith.constant 0 : index
    %c0_15 = arith.constant 0 : index
    %32 = vector.load %arg5[%c0_13, %c0_14, %c0_15] : memref<1x16x16xf32, #tpu.memory_space<vmem>>, vector<1x16x16xf32>
    %33 = vector.shape_cast %32 : vector<1x16x16xf32> to vector<16x16xf32>
    %34 = vector.shape_cast %31 : vector<16x16xf32> to vector<1x16x16xf32>
    tpu.vector_store %arg5[%c0_13, %c0_14, %c0_15], %34 {strides = array<i32>} : memref<1x16x16xf32, #tpu.memory_space<vmem>>, vector<1x16x16xf32>,
    return
  }
  func.func @transform_0(%arg0: i32, %arg1: i32) -> (i32, i32, i32) {
    %c0_i32 = arith.constant 0 : i32
    %c0_i32_0 = arith.constant 0 : i32
    return %arg0, %arg1, %c0_i32 : i32, i32, i32
  }
  func.func @transform_1(%arg0: i32, %arg1: i32) -> (i32, i32, i32, i32) {
    %c0_i32 = arith.constant 0 : i32
    %c0_i32_0 = arith.constant 0 : i32
    %c0_i32_1 = arith.constant 0 : i32
    return %arg0, %arg1, %c0_i32, %c0_i32_0 : i32, i32, i32, i32
  }
  func.func @transform_2(%arg0: i32, %arg1: i32) -> (i32, i32, i32, i32) {
    %c0_i32 = arith.constant 0 : i32
    %c0_i32_0 = arith.constant 0 : i32
    %c0_i32_1 = arith.constant 0 : i32
    return %arg0, %arg1, %c0_i32, %c0_i32_0 : i32, i32, i32, i32
  }
  func.func @transform_3(%arg0: i32, %arg1: i32) -> (i32, i32, i32) {
    %c0_i32 = arith.constant 0 : i32
    %c0_i32_0 = arith.constant 0 : i32
    return %arg0, %arg1, %c0_i32 : i32, i32, i32
  }
}

</mosaic_0001>

<llo_original>
// kernel: tpu_custom_call.1
$region0: #{tpu_custom_call.1}
  #allocation0 [shape = 'u32[]', space=smem, size = 0x4, offset = 0x4, fixed_abs, tag = 'smem constant byte address 0x4 - core index']
  #allocation1 [shape = 'u32[144,128]{1,0:T(1,128)}', space=vmem, size = 0x12000, scoped, tag = 'internal scratch']
  %s0 = inlined_call_operand.hbm [shape: f32[2,16,16], index: 0, kind: input, shape index: {}]
  %s1 = inlined_call_operand.vmem [shape: f32[2,1,1,16], index: 1, kind: input, shape index: {}]
  %s2 = inlined_call_operand.vmem [shape: f32[2,1,1,16], index: 2, kind: input, shape index: {}]
  %s3 = inlined_call_operand.hbm [shape: f32[2,16,16], index: 3, kind: output, shape index: {}]
  %s4 = sld [smem:[#allocation0]]
  $region49: #{tpu_custom_call.1} parent=0
    _
  %s6 = ssub.s32 1, %s4
  %s7 = scalar_select 0, %s6, %s4
  $region1: #{tpu_custom_call.1} parent=0
    #allocation2 [shape = 'u8[16384]{0}', space=vmem, size = 0x4000, scoped, tag = 'input window, operand 0']
    #allocation3 [shape = 's32[2]{0}', space=sflag, size = 0x8, scoped, tag = 'scoped memory for tpu_custom_call.1']
    #allocation4 [shape = 's32[2]{0}', space=sflag, size = 0x8, scoped, tag = 'scoped memory for tpu_custom_call.1']
    #allocation5 [shape = 'u8[16384]{0}', space=vmem, size = 0x4000, scoped, tag = 'output window, operand 0']
    %8 = vsyncpa [#allocation3], 0
    %s9 = scalar_lea.sflag [#allocation3], 1
    %10 = vsyncpa %s9, 0
    %11 = vsyncpa [#allocation4], 0
    %s12 = scalar_lea.sflag [#allocation4], 1
    %13 = vsyncpa %s12, 0
    loop: start=0, step=1, limit=4
    $region2: #{tpu_custom_call.1} parent=1 // loop_pre_header
      _
    $region3: #{tpu_custom_call.1} parent=1 // loop_header
      %s15 = sphi 0, %s19
      %p16 = scmp.ge.s32.totalorder %s15, 4
      %s22 = sphi 0, %s34
      %s23 = sphi 0, %s30
      %s24 = sphi 0, %s22
      %s25 = sphi 0, %s23
      %s26 = sphi 0, %s24
      %s27 = sphi 0, %s25
      %s39 = sphi 0, %s41
      %s42 = sphi 0, %s39
      %s43 = sphi 0, %s42
      %s59 = sphi 0, %s43
      %s67 = sphi 0, %s69
      %s70 = sphi 0, %s67
      %s71 = sphi 0, %s70
      %s87 = sphi 0, %s71
      %s95 = sphi 0, %s97
      %s98 = sphi 0, %s95
      %s99 = sphi 0, %s98
      %s115 = sphi 0, %s99
      %s123 = sphi 0, %s125
      %s126 = sphi 0, %s123
      %s127 = sphi 0, %s126
      %s143 = sphi 0, %s127
    $region4: #{tpu_custom_call.1} parent=1 // loop_header_branch
      %18 = sbr.rel (%p16) target = $region8
    $region5: #{tpu_custom_call.1} parent=1 // loop_body
      %s20 = ssub.s32 %s15, 1
      %s21 = ssub.s32 %s15, 2
      %s28 = sadd.s32 1, %s23
      %p29 = scmp.ge.s32.totalorder %s28, 1
      %s30 = scalar_select %p29, 0, %s28
      %s31 = sadd.s32 1, %s22
      %s32 = scalar_select %p29, %s31, %s22
      %p33 = scmp.ge.s32.totalorder %s32, 2
      %s34 = scalar_select %p33, 0, %s32
      %s35 = ssub.s32 %s22, %s34
      %s36 = ssub.s32 %s23, %s30
      %s37 = sor.u32 %s35, %s36
      %p38 = scmp.eq.s32.totalorder %s37, 0
      %s40 = sadd.s32 %s39, 1
      %s41 = scalar_select %p38, %s39, %s40
      %p44 = pneg %p38
      %p45 = scmp.eq.s32.totalorder %s15, 1
      %p46 = por %p44, %p45
      %p47 = scmp.ne.s32.totalorder %s39, %s42
      %p48 = scmp.eq.s32.totalorder %s15, 0
      %p49 = por %p47, %p48
      %p50 = scmp.ne.s32.totalorder %s39, %s42
      %p51 = scmp.eq.s32.totalorder %s20, 1
      %p52 = por %p50, %p51
      %p53 = scmp.ne.s32.totalorder %s42, %s43
      %p54 = scmp.eq.s32.totalorder %s20, 0
      %p55 = por %p53, %p54
      %p56 = scmp.ne.s32.totalorder %s42, %s43
      %p57 = scmp.eq.s32.totalorder %s21, 1
      %p58 = por %p56, %p57
      %p60 = scmp.ne.s32.totalorder %s43, %s59
      %p61 = scmp.eq.s32.totalorder %s21, 0
      %p62 = por %p60, %p61
      %s63 = ssub.s32 %s22, %s34
      %s64 = ssub.s32 %s23, %s30
      %s65 = sor.u32 %s63, %s64
      %p66 = scmp.eq.s32.totalorder %s65, 0
      %s68 = sadd.s32 %s67, 1
      %s69 = scalar_select %p66, %s67, %s68
      %p72 = pneg %p66
      %p73 = scmp.eq.s32.totalorder %s15, 1
      %p74 = por %p72, %p73
      %p75 = scmp.ne.s32.totalorder %s67, %s70
      %p76 = scmp.eq.s32.totalorder %s15, 0
      %p77 = por %p75, %p76
      %p78 = scmp.ne.s32.totalorder %s67, %s70
      %p79 = scmp.eq.s32.totalorder %s20, 1
      %p80 = por %p78, %p79
      %p81 = scmp.ne.s32.totalorder %s70, %s71
      %p82 = scmp.eq.s32.totalorder %s20, 0
      %p83 = por %p81, %p82
      %p84 = scmp.ne.s32.totalorder %s70, %s71
      %p85 = scmp.eq.s32.totalorder %s21, 1
      %p86 = por %p84, %p85
      %p88 = scmp.ne.s32.totalorder %s71, %s87
      %p89 = scmp.eq.s32.totalorder %s21, 0
      %p90 = por %p88, %p89
      %s91 = ssub.s32 %s22, %s34
      %s92 = ssub.s32 %s23, %s30
      %s93 = sor.u32 %s91, %s92
      %p94 = scmp.eq.s32.totalorder %s93, 0
      %s96 = sadd.s32 %s95, 1
      %s97 = scalar_select %p94, %s95, %s96
      %p100 = pneg %p94
      %p101 = scmp.eq.s32.totalorder %s15, 1
      %p102 = por %p100, %p101
      %p103 = scmp.ne.s32.totalorder %s95, %s98
      %p104 = scmp.eq.s32.totalorder %s15, 0
      %p105 = por %p103, %p104
      %p106 = scmp.ne.s32.totalorder %s95, %s98
      %p107 = scmp.eq.s32.totalorder %s20, 1
      %p108 = por %p106, %p107
      %p109 = scmp.ne.s32.totalorder %s98, %s99
      %p110 = scmp.eq.s32.totalorder %s20, 0
      %p111 = por %p109, %p110
      %p112 = scmp.ne.s32.totalorder %s98, %s99
      %p113 = scmp.eq.s32.totalorder %s21, 1
      %p114 = por %p112, %p113
      %p116 = scmp.ne.s32.totalorder %s99, %s115
      %p117 = scmp.eq.s32.totalorder %s21, 0
      %p118 = por %p116, %p117
      %s119 = ssub.s32 %s22, %s34
      %s120 = ssub.s32 %s23, %s30
      %s121 = sor.u32 %s119, %s120
      %p122 = scmp.eq.s32.totalorder %s121, 0
      %s124 = sadd.s32 %s123, 1
      %s125 = scalar_select %p122, %s123, %s124
      %p128 = pneg %p122
      %p129 = scmp.eq.s32.totalorder %s15, 1
      %p130 = por %p128, %p129
      %p131 = scmp.ne.s32.totalorder %s123, %s126
      %p132 = scmp.eq.s32.totalorder %s15, 0
      %p133 = por %p131, %p132
      %p134 = scmp.ne.s32.totalorder %s123, %s126
      %p135 = scmp.eq.s32.totalorder %s20, 1
      %p136 = por %p134, %p135
      %p137 = scmp.ne.s32.totalorder %s126, %s127
      %p138 = scmp.eq.s32.totalorder %s20, 0
      %p139 = por %p137, %p138
      %p140 = scmp.ne.s32.totalorder %s126, %s127
      %p141 = scmp.eq.s32.totalorder %s21, 1
      %p142 = por %p140, %p141
      %p144 = scmp.ne.s32.totalorder %s127, %s143
      %p145 = scmp.eq.s32.totalorder %s21, 0
      %p146 = por %p144, %p145
      %p147 = scmp.le.s32.totalorder 1, %s15
      %p148 = scmp.lt.s32.totalorder %s15, 3
      %p149 = pnand %p147, %p148
      %p150 = pneg %p149
      // Predicated region
      $region9: #{tpu_custom_call.1} parent=5 // pred_check
        _
      $region10: #{tpu_custom_call.1} parent=5 // pred_check_branch
        %152 = sbr.rel (%p149) target = $region12
      $region11: #{tpu_custom_call.1} parent=5 // pred_region
        %s153 = ssub.s32 %s15, 1
      $region12: #{tpu_custom_call.1} parent=5 // pred_fallthru
        _
      %p154 = scmp.lt.s32.totalorder %s15, 2
      // Predicated region
      $region13: #{tpu_custom_call.1} parent=5 // pred_check
        %p155 = pneg %p154
      $region14: #{tpu_custom_call.1} parent=5 // pred_check_branch
        %157 = sbr.rel (%p155) target = $region16
      $region15: #{tpu_custom_call.1} parent=5 // pred_region
        // Predicated region
        $region17: #{tpu_custom_call.1} parent=15 // pred_check
          %p158 = pneg %p49
        $region18: #{tpu_custom_call.1} parent=15 // pred_check_branch
          %160 = sbr.rel (%p158) target = $region20
        $region19: #{tpu_custom_call.1} parent=15 // pred_region
          %s161 = sand.u32 %s39, 1
          %s162 = scalar_lea.sflag [#allocation3], %s161
          %s163 = sand.u32 %s39, 1
          %s164 = smul.addr %s163, 16
          %s165 = scalar_lea.vmem [#allocation2], %s164
          %s166 = smul.u32 2, %s23
          %s168 = ssub.s32 256, 256
          %169 = vsyncadd %s162, %s168
          %s170 = smul.addr %s22, 2
          %s171 = sadd.s32 %s166, %s170
          %s172 = smul.addr %s171, 128
          %s173 = scalar_lea.hbm %s0, %s172
          %s174 = sshll.u32 %s165, 4
          %s175 = int_to_ptr.vmem [resolvable:$true] %s174
          %180 = dma.hbm_to_vmem [thread:$0]  %s173, 256, %s175, %s162, 128, 128, 8
        $region20: #{tpu_custom_call.1} parent=15 // pred_fallthru
          _
        // Predicated region
        $region21: #{tpu_custom_call.1} parent=15 // pred_check
          %p181 = pneg %p77
        $region22: #{tpu_custom_call.1} parent=15 // pred_check_branch
          %183 = sbr.rel (%p181) target = $region24
        $region23: #{tpu_custom_call.1} parent=15 // pred_region
          %p184 = scmp.lt.s32.totalorder %s22, 1
          %s185 = scalar_select %p184, %s22, 1
          %p186 = scmp.lt.s32.totalorder %s23, 0
          %s187 = scalar_select %p186, %s23, 0
          %s188 = sadd.s32 %s187, %s185
          %s189 = scalar_lea.vmem %s1, %s188
        $region24: #{tpu_custom_call.1} parent=15 // pred_fallthru
          _
        // Predicated region
        $region25: #{tpu_custom_call.1} parent=15 // pred_check
          %p190 = pneg %p105
        $region26: #{tpu_custom_call.1} parent=15 // pred_check_branch
          %192 = sbr.rel (%p190) target = $region28
        $region27: #{tpu_custom_call.1} parent=15 // pred_region
          %p193 = scmp.lt.s32.totalorder %s22, 1
          %s194 = scalar_select %p193, %s22, 1
          %p195 = scmp.lt.s32.totalorder %s23, 0
          %s196 = scalar_select %p195, %s23, 0
          %s197 = sadd.s32 %s196, %s194
          %s198 = scalar_lea.vmem %s2, %s197
        $region28: #{tpu_custom_call.1} parent=15 // pred_fallthru
          _
      $region16: #{tpu_custom_call.1} parent=5 // pred_fallthru
        _
      %p199 = scmp.le.s32.totalorder 1, %s15
      %p200 = scmp.lt.s32.totalorder %s15, 3
      %p201 = pnand %p199, %p200
      %p202 = pneg %p201
      // Predicated region
      $region29: #{tpu_custom_call.1} parent=5 // pred_check
        _
      $region30: #{tpu_custom_call.1} parent=5 // pred_check_branch
        %204 = sbr.rel (%p201) target = $region32
      $region31: #{tpu_custom_call.1} parent=5 // pred_region
        %s205 = ssub.s32 %s15, 1
        %s206 = sand.u32 %s42, 1
        %s207 = scalar_lea.sflag [#allocation3], %s206
        %s208 = sand.u32 %s42, 1
        %s209 = smul.addr %s208, 16
        %s210 = scalar_lea.vmem [#allocation2], %s209
        // Predicated region
        $region33: #{tpu_custom_call.1} parent=31 // pred_check
          %p211 = pneg %p55
        $region34: #{tpu_custom_call.1} parent=31 // pred_check_branch
          %213 = sbr.rel (%p211) target = $region36
        $region35: #{tpu_custom_call.1} parent=31 // pred_region
          %214 = dma.done %s207, 256
        $region36: #{tpu_custom_call.1} parent=31 // pred_fallthru
          _
        %s215 = sand.u32 %s42, 1
        %s216 = scalar_lea.sflag [#allocation3], %s215
        %s217 = sand.u32 %s42, 1
        %s218 = smul.addr %s217, 16
        %s219 = scalar_lea.vmem [#allocation2], %s218
        %p220 = pneg %p55
        %p221 = pneg %p52
        %p222 = scmp.lt.s32.totalorder %s24, 1
        %s223 = scalar_select %p222, %s24, 1
        %p224 = scmp.lt.s32.totalorder %s25, 0
        %s225 = scalar_select %p224, %s25, 0
        %s226 = sadd.s32 %s225, %s223
        %s227 = scalar_lea.vmem %s1, %s226
        %p228 = pneg %p83
        %p229 = pneg %p80
        %p230 = scmp.lt.s32.totalorder %s24, 1
        %s231 = scalar_select %p230, %s24, 1
        %p232 = scmp.lt.s32.totalorder %s25, 0
        %s233 = scalar_select %p232, %s25, 0
        %s234 = sadd.s32 %s233, %s231
        %s235 = scalar_lea.vmem %s2, %s234
        %p236 = pneg %p111
        %p237 = pneg %p108
        %p238 = pneg %p139
        %p239 = pneg %p136
        %s240 = sand.u32 %s126, 1
        %s241 = scalar_lea.sflag [#allocation4], %s240
        %s242 = sand.u32 %s126, 1
        %s243 = smul.addr %s242, 16
        %s244 = scalar_lea.vmem [#allocation5], %s243
        %s245 = smul.u32 2, %s25
        %p246 = scmp.lt.s32.totalorder %s24, 1
        %s247 = scalar_select %p246, %s24, 1
        %p248 = scmp.lt.s32.totalorder %s25, 0
        %s249 = scalar_select %p248, %s25, 0
        %s250 = sadd.s32 %s249, %s247
        %s251 = scalar_lea.vmem %s1, %s250
        %p252 = scmp.lt.s32.totalorder %s24, 1
        %s253 = scalar_select %p252, %s24, 1
        %p254 = scmp.lt.s32.totalorder %s25, 0
        %s255 = scalar_select %p254, %s25, 0
        %s256 = sadd.s32 %s255, %s253
        %s257 = scalar_lea.vmem %s2, %s256
        %s258 = smul.u32 2, %s25
        %v259 = vld [vmem:[%s210] sm:$0xff]
        %v260 = vld [vmem:[%s210 + $0x8] sm:$0xff]
        %v261 = vld [vmem:[%s251] sm:$0x1]
        %v262 = vld [vmem:[%s257] sm:$0x1]
        %vm265 = vcmask 1040384
        %v266 = vrot.slane %v259, 7
        %v267 = vrot.slane %v260, 7
        %v268 = vsel %vm265, %v266, %v267
        %v271 = vsel %vm265, %v261, %v266
        %vm272 = vcmask 1046528
        %v273 = vrot.slane %v259, 1
        %v274 = vrot.slane %v260, 1
        %v275 = vsel %vm272, %v273, %v274
        %v279 = vlaneseq
        %v280 = vshrl.u32 %v279, 7
        %v281 = vsub.s32 0, %v280
        %v282 = vrot.slane %v262, %v281
        %v284 = vsel %vm272, %v274, %v282
        %285 = vrot.lane.b32.xlu0 %v259, 1
        %v286 = vpop.permute.xlu0 %285
        %287 = vrot.lane.b32.xlu0 %v260, 1
        %v288 = vpop.permute.xlu0 %287
        %vm291 = vcmask 7168
        %v292 = vsel %vm291, %v259, %v286
        %v293 = vsel %vm291, %v260, %v288
        %294 = vrot.lane.b32.xlu0 %v259, 127
        %v295 = vpop.permute.xlu0 %294
        %296 = vrot.lane.b32.xlu0 %v260, 127
        %v297 = vpop.permute.xlu0 %296
        %vm300 = vcmask 121856
        %v301 = vsel %vm300, %v295, %v259
        %v302 = vsel %vm300, %v297, %v260
        %v303 = vadd.f32 %v271, %v275
        %v304 = vadd.f32 %v268, %v284
        %v305 = vadd.f32 %v303, %v292
        %v306 = vadd.f32 %v304, %v293
        %v307 = vadd.f32 %v305, %v301
        %v308 = vadd.f32 %v306, %v302
        %v309 = vmul.f32 %v259, 4.0
        %v310 = vmul.f32 %v260, 4.0
        %v311 = vsub.f32 %v307, %v309
        %v312 = vsub.f32 %v308, %v310
        %v313 = vmul.f32 %v311, 0.01
        %v314 = vmul.f32 %v312, 0.01
        %v315 = vmul.f32 %v259, 1.01
        %v316 = vmul.f32 %v260, 1.01
        %v317 = vadd.f32 %v313, %v315
        %v318 = vadd.f32 %v314, %v316
        %v319 = vmul.f32 %v259, %v259
        %v320 = vmul.f32 %v260, %v260
        %v321 = vmul.f32 %v319, %v259
        %v322 = vmul.f32 %v320, %v260
        %v323 = vmul.f32 %v321, 0.01
        %v324 = vmul.f32 %v322, 0.01
        %v325 = vsub.f32 %v317, %v323
        %v326 = vsub.f32 %v318, %v324
        %vm327 = vcmask 130048
        %328 = vst.msk [vmem:[%s244] sm:$0xff] %vm327, %v325
        %329 = vst.msk [vmem:[%s244 + $0x8] sm:$0xff] %vm327, %v326
        %s330 = sand.u32 %s126, 1
        %s331 = scalar_lea.sflag [#allocation4], %s330
        %s332 = sand.u32 %s126, 1
        %s333 = smul.addr %s332, 16
        %s334 = scalar_lea.vmem [#allocation5], %s333
        // Predicated region
        $region37: #{tpu_custom_call.1} parent=31 // pred_check
          %p335 = pneg %p136
        $region38: #{tpu_custom_call.1} parent=31 // pred_check_branch
          %337 = sbr.rel (%p335) target = $region40
        $region39: #{tpu_custom_call.1} parent=31 // pred_region
          %s338 = smul.u32 2, %s25
          %s340 = ssub.s32 256, 256
          %341 = vsyncadd %s331, %s340
          %s342 = smul.addr %s24, 2
          %s343 = sadd.s32 %s338, %s342
          %s344 = smul.addr %s343, 128
          %s345 = scalar_lea.hbm %s3, %s344
          %s346 = sshll.u32 %s334, 4
          %s347 = int_to_ptr.vmem [resolvable:$true] %s346
          %352 = dma.vmem_to_hbm [thread:$0]  %s347, 256, %s345, %s331, 128, 128, 8
        $region40: #{tpu_custom_call.1} parent=31 // pred_fallthru
          _
      $region32: #{tpu_custom_call.1} parent=5 // pred_fallthru
        _
      %p353 = scmp.le.s32.totalorder 2, %s15
      // Predicated region
      $region41: #{tpu_custom_call.1} parent=5 // pred_check
        %p354 = pneg %p353
      $region42: #{tpu_custom_call.1} parent=5 // pred_check_branch
        %356 = sbr.rel (%p354) target = $region44
      $region43: #{tpu_custom_call.1} parent=5 // pred_region
        %s357 = ssub.s32 %s15, 2
        // Predicated region
        $region45: #{tpu_custom_call.1} parent=43 // pred_check
          %p358 = pneg %p142
        $region46: #{tpu_custom_call.1} parent=43 // pred_check_branch
          %360 = sbr.rel (%p358) target = $region48
        $region47: #{tpu_custom_call.1} parent=43 // pred_region
          %s361 = sand.u32 %s127, 1
          %s362 = scalar_lea.sflag [#allocation4], %s361
          %s363 = sand.u32 %s127, 1
          %s364 = smul.addr %s363, 16
          %s365 = scalar_lea.vmem [#allocation5], %s364
          %366 = dma.done %s362, 256
        $region48: #{tpu_custom_call.1} parent=43 // pred_fallthru
          _
      $region44: #{tpu_custom_call.1} parent=5 // pred_fallthru
        _
    $region6: #{tpu_custom_call.1} parent=1 // loop_footer
      %s19 = sadd.s32 1, %s15
    $region7: #{tpu_custom_call.1} parent=1 // loop_footer_branch
      %14 = sbr.rel target = $region3
    $region8: #{tpu_custom_call.1} parent=1 // loop_exit
      _
    %367 = vsyncpa [#allocation3], 1
    %s368 = scalar_lea.sflag [#allocation3], 1
    %369 = vsyncpa %s368, 1
    %370 = vsyncpa [#allocation4], 1
    %s371 = scalar_lea.sflag [#allocation4], 1
    %372 = vsyncpa %s371, 1

</llo_original>
